<compile_context>
chip_gen: v6e
topology: v6e:2x2x1
jax: 0.10.0
libtpu: 0.0.40
codegen_flags: <defaults>
</compile_context>

<pallas_src>
import math

import jax
import jax.numpy as jnp
from jax.experimental import pallas as pl
from jax.experimental.pallas import tpu as pltpu


# -----------------------------------------------------------------------------
# Primary path: zero-copy pass-through (output buffer IS the input buffer).
# -----------------------------------------------------------------------------
def _alias_noop_kernel(x_hbm_ref, o_hbm_ref):
    # No data movement: the output is aliased to the input via
    # input_output_aliases, so there is nothing to compute.  touch() records a
    # fake read/write dependency so the aliased output counts as produced.
    del x_hbm_ref
    pltpu.touch(o_hbm_ref)


def _aliased_passthrough(x2d):
    return pl.pallas_call(
        _alias_noop_kernel,
        out_shape=jax.ShapeDtypeStruct(x2d.shape, x2d.dtype),
        in_specs=[pl.BlockSpec(memory_space=pl.ANY)],
        out_specs=pl.BlockSpec(memory_space=pl.ANY),
        input_output_aliases={0: 0},
    )(x2d)


# -----------------------------------------------------------------------------
# Fallback path: materialized copy, tiled lane-dense blocks (only used if the
# zero-copy alias kernel fails to lower on this jax/libtpu install).
# -----------------------------------------------------------------------------
_LANES = 128
_SUBLANES = 8
_ROWS_PER_BLOCK = 1024  # 1024 * 128 * 4 B = 512 KiB/block: good DMA overlap,
                        # well under the scoped-VMEM limit on v5e/v6e/v7x.


def _copy_kernel(x_ref, o_ref):
    o_ref[...] = x_ref[...]


def _tiled_copy_passthrough(x2d):
    n = x2d.shape[0] * x2d.shape[1]
    if n % (_SUBLANES * _LANES) == 0:
        # Lane-dense slab: last dim = 128 lanes, rows a multiple of 8 sublanes,
        # so stores are unmasked full-vreg vst.
        rows = n // _LANES
        tb = min(_ROWS_PER_BLOCK, rows)
        while rows % tb != 0:   # tb stays a power of two >= 8 (rows % 8 == 0)
            tb //= 2
        x_ld = x2d.reshape(rows, _LANES)
        out = pl.pallas_call(
            _copy_kernel,
            out_shape=jax.ShapeDtypeStruct((rows, _LANES), x2d.dtype),
            grid=(rows // tb,),
            in_specs=[pl.BlockSpec((tb, _LANES), lambda i: (i, 0))],
            out_specs=pl.BlockSpec((tb, _LANES), lambda i: (i, 0)),
            compiler_params=pltpu.CompilerParams(
                dimension_semantics=("parallel",),  # lets v7x shard over 2 TCs
            ),
        )(x_ld)
        return out.reshape(x2d.shape)
    # Shapes that do not tile cleanly: single full-array block (block dims ==
    # array dims, so the (8, 128) divisibility constraint does not apply).
    return pl.pallas_call(
        _copy_kernel,
        out_shape=jax.ShapeDtypeStruct(x2d.shape, x2d.dtype),
        grid=(1,),
        in_specs=[pl.BlockSpec(x2d.shape, lambda i: (0, 0))],
        out_specs=pl.BlockSpec(x2d.shape, lambda i: (0, 0)),
    )(x2d)


# -----------------------------------------------------------------------------
# Forward wrapper (reshapes are free XLA metadata ops, done outside the kernel).
# -----------------------------------------------------------------------------
def _build_forward():
    # Prefer the zero-copy aliased kernel; probe once and fall back to the
    # tiled lane-dense copy if it cannot be lowered on this install.
    try:
        probe = jnp.zeros((_SUBLANES, _LANES), jnp.float32)
        jax.block_until_ready(_aliased_passthrough(probe))
        passthrough = _aliased_passthrough
    except Exception:  # pragma: no cover - conservative fallback
        passthrough = _tiled_copy_passthrough

    @jax.jit
    def forward(x):
        """x: (B, C, H, W) -> (B, C*H*W, 1, 1), identical to torch .view."""
        b = x.shape[0]
        f = math.prod(x.shape[1:])
        x_flat = x.reshape(b, f)          # row-major, matches torch .view(B, -1)
        out_flat = passthrough(x_flat)
        return out_flat.reshape(b, f, 1, 1)

    return forward


simple_hand_encoder_forward = _build_forward()


if __name__ == "__main__":
    key = jax.random.PRNGKey(0)
    B, C, H, W = 2, 4, 16, 16
    x = jax.random.normal(key, (B, C, H, W), dtype=jnp.float32)

    out = simple_hand_encoder_forward(x)
    out = jax.block_until_ready(out)

    # Sanity check against the pure-JAX reference of torch's .view semantics.
    ref = x.reshape(B, C * H * W, 1, 1)
    assert out.shape == (B, C * H * W, 1, 1), out.shape
    assert jnp.array_equal(out, ref), "mismatch vs reference reshape"

    print("KERNEL_OK")
</pallas_src>

<mosaic_0001>
module attributes {stable_mosaic.version = 11 : i64} {
  func.func @_alias_noop_kernel(%arg0: memref<8x128xf32, #tpu.memory_space<any>>, %arg1: memref<8x128xf32, #tpu.memory_space<any>>) attributes {dimension_semantics = [], scalar_prefetch = 0 : i64, scratch_operands = 0 : i64, tpu.core_type = #tpu.core_type<tc>} {
    return
  }
}

module attributes {stable_mosaic.version = 11 : i64} {
  func.func @_copy_kernel(%arg0: i32, %arg1: memref<16x128xf32, #tpu.memory_space<vmem>>, %arg2: memref<16x128xf32, #tpu.memory_space<vmem>>) attributes {dimension_semantics = [#tpu.dimension_semantics<parallel>], iteration_bounds = array<i64: 1>, scalar_prefetch = 0 : i64, scratch_operands = 0 : i64, tpu.core_type = #tpu.core_type<tc>, window_params = [{transform_indices = @transform_0, window_bounds = array<i64: 16, 128>}, {transform_indices = @transform_1, window_bounds = array<i64: 16, 128>}]} {
    %c0 = arith.constant 0 : index
    %c0_0 = arith.constant 0 : index
    %0 = vector.load %arg1[%c0, %c0_0] : memref<16x128xf32, #tpu.memory_space<vmem>>, vector<16x128xf32>
    %c0_1 = arith.constant 0 : index
    %c0_2 = arith.constant 0 : index
    %1 = vector.load %arg2[%c0_1, %c0_2] : memref<16x128xf32, #tpu.memory_space<vmem>>, vector<16x128xf32>
    tpu.vector_store %arg2[%c0_1, %c0_2], %0 {strides = array<i32>} : memref<16x128xf32, #tpu.memory_space<vmem>>, vector<16x128xf32>,
    return
  }
  func.func @transform_0(%arg0: i32) -> (i32, i32) {
    %c0_i32 = arith.constant 0 : i32
    %c0_i32_0 = arith.constant 0 : i32
    return %arg0, %c0_i32 : i32, i32
  }
  func.func @transform_1(%arg0: i32) -> (i32, i32) {
    %c0_i32 = arith.constant 0 : i32
    %c0_i32_0 = arith.constant 0 : i32
    return %arg0, %c0_i32 : i32, i32
  }
}

</mosaic_0001>

<llo_original>
// kernel: tpu_custom_call.1
$region0: #{tpu_custom_call.1}
  #allocation0 [shape = 'u32[]', space=smem, size = 0x4, offset = 0x4, fixed_abs, tag = 'smem constant byte address 0x4 - core index']
  #allocation1 [shape = 'u32[144,128]{1,0:T(1,128)}', space=vmem, size = 0x12000, scoped, tag = 'internal scratch']
  %s0 = inlined_call_operand.hbm [shape: f32[8,128], index: 0, kind: input, shape index: {}, may-alias: {0,1}]
  %s1 = inlined_call_operand.hbm [shape: f32[8,128], index: 1, kind: output, shape index: {}, may-alias: {0,1}]
  %s2 = sld [smem:[#allocation0]]
  $region2: #{tpu_custom_call.1} parent=0
    _
  %s4 = ssub.s32 1, %s2
  %s5 = scalar_select 0, %s4, %s2

// kernel: forward.1
$region0: #{forward.1}
  #allocation0 [shape = 'u32[]', space=smem, size = 0x4, offset = 0x4, fixed_abs, tag = 'smem constant byte address 0x4 - core index']
  #allocation1 [shape = 'u32[144,128]{1,0:T(1,128)}', space=vmem, size = 0x12000, scoped, tag = 'internal scratch']
  %s0 = inlined_call_operand.vmem [shape: f32[16,128], index: 0, kind: input, shape index: {}]
  %s1 = inlined_call_operand.hbm [shape: f32[16,128], index: 1, kind: output, shape index: {}]
  %s2 = sld [smem:[#allocation0]]
  $region14: #{forward.1} parent=0
    _
  %s4 = ssub.s32 1, %s2
  %s5 = scalar_select 0, %s4, %s2
  $region1: #{forward.1} parent=0
    #allocation2 [shape = 'u8[8192]{0}', space=vmem, size = 0x2000, scoped, tag = 'output window, operand 0, single buffered']
    #allocation3 [shape = 's32[1]{0}', space=sflag, size = 0x4, scoped, tag = 'scoped memory for forward.1']
    %6 = vsyncpa [#allocation3], 0
    // Predicated region
    $region2: #{forward.1} parent=1 // pred_check
      _
    $region3: #{forward.1} parent=1 // pred_check_branch
      %8 = sbr.rel (0) target = $region5
    $region4: #{forward.1} parent=1 // pred_region
      _
    $region5: #{forward.1} parent=1 // pred_fallthru
      _
    %v9 = vld [vmem:[%s0] sm:$0xff]
    %v10 = vld [vmem:[%s0 + $0x8] sm:$0xff]
    %11 = vst [vmem:[#allocation2] sm:$0xff] %v9
    %12 = vst [vmem:[#allocation2 + $0x8] sm:$0xff] %v10
    // Predicated region
    $region6: #{forward.1} parent=1 // pred_check
      _
    $region7: #{forward.1} parent=1 // pred_check_branch
      %14 = sbr.rel (0) target = $region9
    $region8: #{forward.1} parent=1 // pred_region
      %s16 = ssub.s32 256, 256
      %17 = vsyncadd [#allocation3], %s16
      %s18 = sshll.u32 [#allocation2], 4
      %s19 = int_to_ptr.vmem [resolvable:$true] %s18
      %24 = dma.vmem_to_hbm [thread:$0]  %s19, 256, %s1, [#allocation3], 128, 128, 8
    $region9: #{forward.1} parent=1 // pred_fallthru
      _
    // Predicated region
    $region10: #{forward.1} parent=1 // pred_check
      _
    $region11: #{forward.1} parent=1 // pred_check_branch
      %26 = sbr.rel (0) target = $region13
    $region12: #{forward.1} parent=1 // pred_region
      %27 = dma.done [#allocation3], 256
    $region13: #{forward.1} parent=1 // pred_fallthru
      _
    %28 = vsyncpa [#allocation3], 1

</llo_original>
